<compile_context>
chip_gen: v7x
topology: tpu7x:2x2x1
jax: 0.10.0
libtpu: 0.0.40
codegen_flags: <defaults>
</compile_context>

<pallas_src>
import functools

import jax
import jax.numpy as jnp
import numpy as np
from jax.experimental import pallas as pl
from jax.experimental.pallas import tpu as pltpu

_EPS = 1e-8

# ---------------------------------------------------------------------------
# lgamma via Lanczos (g = 7, 9 coefficients), with the partial-fraction series
# c0 + sum_k c_k/(x + k - 1) collapsed into one rational P(x)/Q(x), evaluated
# in t = 1/x (x >= 0.5 always) -> overflow-free, pure VPU Horner.
# ---------------------------------------------------------------------------
_LANCZOS_G = 7.0
_LANCZOS_COEFS = (
    0.99999999999980993,
    676.5203681218851,
    -1259.1392167224028,
    771.32342877765313,
    -176.61502916214059,
    12.507343278686905,
    -0.13857109526572012,
    9.9843695780195716e-6,
    1.5056327351493116e-7,
)


def _lanczos_rational():
    """Coefficients of t^i (t = 1/x) for P(x)/x^8 and Q(x)/x^8, where
    P(x)/Q(x) == c0 + sum_{k=1..8} c_k / (x + k - 1)."""
    from numpy.polynomial import polynomial as npoly

    roots = [-(k - 1.0) for k in range(1, 9)]          # poles of the series
    q_asc = npoly.polyfromroots(roots)                  # ascending in x, monic
    p_asc = _LANCZOS_COEFS[0] * q_asc
    for k in range(1, 9):
        others = [r for r in roots if r != -(k - 1.0)]
        pk_asc = npoly.polyfromroots(others)            # degree 7
        p_asc = p_asc + _LANCZOS_COEFS[k] * np.concatenate([pk_asc, [0.0]])
    # coefficient of t^i == coefficient of x^(8-i)  -> reverse ascending order
    return (tuple(float(v) for v in p_asc[::-1]),
            tuple(float(v) for v in q_asc[::-1]))


_P_T, _Q_T = _lanczos_rational()


def _poly_in_recip(t, coefs):
    """Horner evaluation of sum_i coefs[i] * t**i (VPU only)."""
    r = coefs[-1] * t + coefs[-2]
    for c in coefs[-3::-1]:
        r = r * t + c
    return r


def _lgamma_main_pq(x):
    """For x >= 0.5:  lgamma(x) = 0.5*log(2*pi) + main + log(P(t)/Q(t)), t = 1/x.

    Returns (main, P, Q).  The additive 0.5*log(2*pi) constant is omitted
    because it cancels in the lgamma *difference* used by the loss.  The
    reciprocal is the approximate EUP one: its relative error only perturbs the
    O(1) log-correction term, not the dominant (x-0.5)*log(s) - s part.
    """
    t = pl.reciprocal(x, approx=True)
    p = _poly_in_recip(t, _P_T)
    q = _poly_in_recip(t, _Q_T)
    s = x + (_LANCZOS_G - 0.5)
    main = (x - 0.5) * jnp.log(s) - s
    return main, p, q


def _softplus(x):
    """Overflow-safe softplus == log1p(exp(x)); one exp + one log1p."""
    return jnp.maximum(x, 0.0) + jnp.log1p(jnp.exp(-jnp.abs(x)))


# ---------------------------------------------------------------------------
# Kernel
# ---------------------------------------------------------------------------
def _nll_negbin_kernel(gene_ref, yp_ref, yt_ref, out_ref, acc_ref, *,
                       n_valid, g_valid, block_n, block_g,
                       mask_rows, mask_cols):
    i = pl.program_id(0)                     # sample-tile ("parallel") axis
    j = pl.program_id(1)                     # gene-tile (reduction) axis

    @pl.when(j == 0)
    def _():
        acc_ref[...] = jnp.zeros_like(acc_ref)

    yp = yp_ref[...]                         # (bn, bg)
    yt = yt_ref[...]                         # (bn, bg)
    theta = gene_ref[0:1, :]                 # (1, bg), broadcasts over samples
    inv_theta = gene_ref[1:2, :]
    log_theta = gene_ref[2:3, :]
    lg_inv_theta = gene_ref[3:4, :]          # lgamma(1/theta + eps), precomputed

    mu = _softplus(yp)
    log1p_mt = jnp.log1p(mu * theta + _EPS)

    # --- t1 = lgamma(yt + 1/theta + eps) - lgamma(yt + 1 + eps) - lgamma(1/theta + eps)
    x1 = yt + inv_theta + _EPS
    small = x1 < 0.5                         # only when yt == 0 and theta > ~2
    xw1 = jnp.where(small, x1 + 1.0, x1)     # lgamma(x) = lgamma(x+1) - log(x)
    x2 = yt + 1.0 + _EPS                     # >= 1 for counts: no small-x branch

    main1, p1, q1 = _lgamma_main_pq(xw1)
    main2, p2, q2 = _lgamma_main_pq(x2)

    # All correction logs (log A1 - log A2 - [small]*log x1) fused into ONE log
    # of a single rational ratio; the 0.5*log(2*pi) constants cancel.
    num = p1 * q2
    den = q1 * p2 * jnp.where(small, x1, 1.0)
    log_corr = jnp.log(num * pl.reciprocal(den, approx=True))

    t1 = (main1 - main2) + log_corr - lg_inv_theta
    t2 = -inv_theta * log1p_mt
    # log(mu*theta / (1 + mu*theta + eps)) == log(mu) + log(theta) - log1p(mu*theta+eps)
    t3 = yt * (jnp.log(mu) + log_theta - log1p_mt)

    loss = jnp.clip(-(t1 + t2 + t3), -300.0, 300.0)

    # Statically-guarded padding mask (only emitted for non-divisible shapes).
    if mask_rows or mask_cols:
        valid = None
        if mask_rows:
            rows = jax.lax.broadcasted_iota(jnp.int32, (block_n, block_g), 0)
            valid = (rows + i * block_n) < n_valid
        if mask_cols:
            cols = jax.lax.broadcasted_iota(jnp.int32, (block_n, block_g), 1)
            cvalid = (cols + j * block_g) < g_valid
            valid = cvalid if valid is None else (valid & cvalid)
        loss = jnp.where(valid, loss, 0.0)

    acc_ref[...] += loss                     # elementwise VPU add, no reduce

    @pl.when(j == pl.num_programs(1) - 1)
    def _():
        # Single cross-lane reduce per N tile; broadcast into the whole
        # (1, 8, 128) block so the store is unmasked and lane-dense.
        out_ref[...] = jnp.sum(acc_ref[...]) + jnp.zeros_like(out_ref)


# ---------------------------------------------------------------------------
# Wrapper
# ---------------------------------------------------------------------------
def _round_up(x, m):
    return ((x + m - 1) // m) * m


def neg_log_neg_bin_loss(y_pred, y_true, var, *, max_block_n=512, max_block_g=512):
    """Pallas implementation of NegLogNegBinLoss.forward.

    y_pred, y_true: (N, G) float32.  var: (G,) or (1, G) float32.
    y_true is expected to be non-negative (counts).
    Returns a scalar float32 (mean NLL over all N*G elements).
    """
    y_pred = jnp.asarray(y_pred, jnp.float32)
    y_true = jnp.asarray(y_true, jnp.float32)
    var = jnp.asarray(var, jnp.float32).reshape(-1)

    n, g = y_pred.shape
    assert y_true.shape == (n, g) and var.shape == (g,)

    # --- tile selection: pad, never fall back to a giant full-dim tile -------
    g128 = _round_up(g, 128)
    bg = min(max_block_g, g128)
    g_pad = _round_up(g128, bg)

    n8 = _round_up(n, 8)
    # Aim for >= 2 tiles along the "parallel" sample axis so both v7x
    # TensorCores are fed (no effect on single-TC v5e/v6e).
    bn = min(max_block_n, max(8, _round_up(pl.cdiv(n8, 2), 8)))
    n_pad = _round_up(n8, bn)

    # --- per-gene constants, computed once (exact divide / exact gammaln) ----
    var_p = jnp.pad(var, (0, g_pad - g))
    theta = _softplus(var_p)[None, :]
    inv_theta = 1.0 / theta
    gene_params = jnp.concatenate(
        [theta, inv_theta, jnp.log(theta),
         jax.scipy.special.gammaln(inv_theta + _EPS),
         jnp.zeros((4, g_pad), jnp.float32)], axis=0)      # (8, G): sublane-aligned

    yp = jnp.pad(y_pred, ((0, n_pad - n), (0, g_pad - g)))
    yt = jnp.pad(y_true, ((0, n_pad - n), (0, g_pad - g)))

    grid = (n_pad // bn, g_pad // bg)
    kernel = functools.partial(
        _nll_negbin_kernel,
        n_valid=n, g_valid=g, block_n=bn, block_g=bg,
        mask_rows=(n_pad != n), mask_cols=(g_pad != g))

    partials = pl.pallas_call(
        kernel,
        out_shape=jax.ShapeDtypeStruct((grid[0], 8, 128), jnp.float32),
        grid_spec=pltpu.PrefetchScalarGridSpec(
            num_scalar_prefetch=0,
            grid=grid,
            in_specs=[
                pl.BlockSpec((8, bg), lambda i, j: (0, j)),     # per-gene params
                pl.BlockSpec((bn, bg), lambda i, j: (i, j)),    # y_pred
                pl.BlockSpec((bn, bg), lambda i, j: (i, j)),    # y_true
            ],
            out_specs=pl.BlockSpec((1, 8, 128), lambda i, j: (i, 0, 0)),
            scratch_shapes=[pltpu.VMEM((bn, bg), jnp.float32)],
        ),
        compiler_params=pltpu.CompilerParams(
            dimension_semantics=("parallel", "arbitrary"),
            vmem_limit_bytes=48 * 1024 * 1024,
        ),
    )(gene_params, yp, yt)

    # One broadcast copy of each partial sum lives in every lane; pick lane 0.
    return partials[:, 0, 0].sum() / jnp.float32(n * g)


# ---------------------------------------------------------------------------
# Pure-JAX reference (faithful to the PyTorch module) for sanity checking.
# ---------------------------------------------------------------------------
def _reference(y_pred, y_true, var):
    eps = 1e-8
    var = var.reshape(1, -1)
    mu = jnp.log1p(jnp.exp(y_pred))
    theta = jnp.log1p(jnp.exp(var))
    lg = jax.scipy.special.gammaln
    t1 = lg(y_true + 1.0 / theta + eps) - lg(y_true + 1.0 + eps) - lg(1.0 / theta + eps)
    t2 = -(1.0 / theta) * jnp.log1p(mu * theta + eps)
    t3 = y_true * jnp.log(mu * theta / (1.0 + mu * theta + eps))
    loss = jnp.clip(-(t1 + t2 + t3), -300.0, 300.0)
    return loss.mean()


if __name__ == "__main__":
    # Case 1: nominal small shape (single tile, no padding).
    k1, k2, k3 = jax.random.split(jax.random.PRNGKey(0), 3)
    N, G = 8, 256  # samples x genes
    y_pred = jax.random.normal(k1, (N, G), jnp.float32)
    y_true = jax.random.randint(k2, (N, G), 0, 20).astype(jnp.float32)  # counts
    var = jax.random.normal(k3, (G,), jnp.float32)

    nll = jax.block_until_ready(neg_log_neg_bin_loss(y_pred, y_true, var))
    ref = jax.block_until_ready(_reference(y_pred, y_true, var))
    np.testing.assert_allclose(np.asarray(nll), np.asarray(ref), rtol=1e-2, atol=1e-2)

    # Case 2: non-divisible shape -> exercises row/column padding masks, a
    # multi-step reduction axis and a 2-tile parallel axis.
    k4, k5, k6 = jax.random.split(jax.random.PRNGKey(1), 3)
    N2, G2 = 13, 300
    y_pred2 = 2.0 * jax.random.normal(k4, (N2, G2), jnp.float32)
    y_true2 = jax.random.randint(k5, (N2, G2), 0, 50).astype(jnp.float32)
    var2 = 1.5 * jax.random.normal(k6, (G2,), jnp.float32)

    nll2 = jax.block_until_ready(
        neg_log_neg_bin_loss(y_pred2, y_true2, var2, max_block_n=8, max_block_g=128))
    ref2 = jax.block_until_ready(_reference(y_pred2, y_true2, var2))
    np.testing.assert_allclose(np.asarray(nll2), np.asarray(ref2), rtol=1e-2, atol=1e-2)

    print("KERNEL_OK")
</pallas_src>

<mosaic_0001>
module attributes {stable_mosaic.version = 11 : i64} {
  func.func @_nll_negbin_kernel(%arg0: i32, %arg1: i32, %arg2: memref<8x256xf32, #tpu.memory_space<vmem>>, %arg3: memref<8x256xf32, #tpu.memory_space<vmem>>, %arg4: memref<8x256xf32, #tpu.memory_space<vmem>>, %arg5: memref<1x8x128xf32, #tpu.memory_space<vmem>>, %arg6: memref<8x256xf32, #tpu.memory_space<vmem>>) attributes {dimension_semantics = [#tpu.dimension_semantics<parallel>, #tpu.dimension_semantics<arbitrary>], iteration_bounds = array<i64: 1, 1>, scalar_prefetch = 0 : i64, scratch_operands = 1 : i64, tpu.core_type = #tpu.core_type<tc>, window_params = [{transform_indices = @transform_0, window_bounds = array<i64: 8, 256>}, {transform_indices = @transform_1, window_bounds = array<i64: 8, 256>}, {transform_indices = @transform_2, window_bounds = array<i64: 8, 256>}, {transform_indices = @transform_3, window_bounds = array<i64: 1, 8, 128>}]} {
    %c0_i32 = arith.constant 0 : i32
    %0 = arith.cmpi eq, %arg1, %c0_i32 : i32
    %1 = arith.extui %0 : i1 to i32
    %c0_i32_0 = arith.constant 0 : i32
    %2 = arith.cmpi ne, %1, %c0_i32_0 : i32
    scf.if %2 {
      %cst_67 = arith.constant 0.000000e+00 : f32
      %186 = vector.broadcast %cst_67 : f32 to vector<8x256xf32>
      %c0_68 = arith.constant 0 : index
      %c0_69 = arith.constant 0 : index
      %187 = vector.load %arg6[%c0_68, %c0_69] : memref<8x256xf32, #tpu.memory_space<vmem>>, vector<8x256xf32>
      tpu.vector_store %arg6[%c0_68, %c0_69], %186 {strides = array<i32>} : memref<8x256xf32, #tpu.memory_space<vmem>>, vector<8x256xf32>,
    } else {
    }
    %c0 = arith.constant 0 : index
    %c0_1 = arith.constant 0 : index
    %3 = vector.load %arg3[%c0, %c0_1] : memref<8x256xf32, #tpu.memory_space<vmem>>, vector<8x256xf32>
    %c0_2 = arith.constant 0 : index
    %c0_3 = arith.constant 0 : index
    %4 = vector.load %arg4[%c0_2, %c0_3] : memref<8x256xf32, #tpu.memory_space<vmem>>, vector<8x256xf32>
    %c0_4 = arith.constant 0 : index
    %c0_5 = arith.constant 0 : index
    %5 = vector.load %arg2[%c0_4, %c0_5] : memref<8x256xf32, #tpu.memory_space<vmem>>, vector<1x256xf32>
    %c1 = arith.constant 1 : index
    %c0_6 = arith.constant 0 : index
    %6 = vector.load %arg2[%c1, %c0_6] : memref<8x256xf32, #tpu.memory_space<vmem>>, vector<1x256xf32>
    %c2 = arith.constant 2 : index
    %c0_7 = arith.constant 0 : index
    %7 = vector.load %arg2[%c2, %c0_7] : memref<8x256xf32, #tpu.memory_space<vmem>>, vector<1x256xf32>
    %c3 = arith.constant 3 : index
    %c0_8 = arith.constant 0 : index
    %8 = vector.load %arg2[%c3, %c0_8] : memref<8x256xf32, #tpu.memory_space<vmem>>, vector<1x256xf32>
    %cst = arith.constant 0.000000e+00 : f32
    %9 = vector.broadcast %cst : f32 to vector<8x256xf32>
    %10 = arith.maximumf %3, %9 : vector<8x256xf32>
    %11 = math.absf %3 : vector<8x256xf32>
    %cst_9 = arith.constant 0.000000e+00 : f32
    %12 = vector.broadcast %cst_9 : f32 to vector<8x256xf32>
    %13 = arith.subf %12, %11 : vector<8x256xf32>
    %14 = math.exp %13 : vector<8x256xf32>
    %15 = math.log1p %14 : vector<8x256xf32>
    %16 = arith.addf %10, %15 : vector<8x256xf32>
    %17 = vector.broadcast %5 : vector<1x256xf32> to vector<8x256xf32>
    %18 = arith.mulf %16, %17 : vector<8x256xf32>
    %cst_10 = arith.constant 9.99999993E-9 : f32
    %19 = vector.broadcast %cst_10 : f32 to vector<8x256xf32>
    %20 = arith.addf %18, %19 : vector<8x256xf32>
    %21 = math.log1p %20 : vector<8x256xf32>
    %22 = vector.broadcast %6 : vector<1x256xf32> to vector<8x256xf32>
    %23 = arith.addf %4, %22 : vector<8x256xf32>
    %cst_11 = arith.constant 9.99999993E-9 : f32
    %24 = vector.broadcast %cst_11 : f32 to vector<8x256xf32>
    %25 = arith.addf %23, %24 : vector<8x256xf32>
    %cst_12 = arith.constant 5.000000e-01 : f32
    %26 = vector.broadcast %cst_12 : f32 to vector<8x256xf32>
    %27 = arith.cmpf olt, %25, %26 : vector<8x256xf32>
    %cst_13 = arith.constant 1.000000e+00 : f32
    %28 = vector.broadcast %cst_13 : f32 to vector<8x256xf32>
    %29 = arith.addf %25, %28 : vector<8x256xf32>
    %30 = arith.select %27, %29, %25 : vector<8x256xi1>, vector<8x256xf32>
    %cst_14 = arith.constant 1.000000e+00 : f32
    %31 = vector.broadcast %cst_14 : f32 to vector<8x256xf32>
    %32 = arith.addf %4, %31 : vector<8x256xf32>
    %cst_15 = arith.constant 9.99999993E-9 : f32
    %33 = vector.broadcast %cst_15 : f32 to vector<8x256xf32>
    %34 = arith.addf %32, %33 : vector<8x256xf32>
    %35 = tpu.reciprocal %30 {approx = true} : vector<8x256xf32> -> vector<8x256xf32>
    %cst_16 = arith.constant 3409662.75 : f32
    %36 = vector.broadcast %cst_16 : f32 to vector<8x256xf32>
    %37 = arith.mulf %36, %35 : vector<8x256xf32>
    %cst_17 = arith.constant 0x4A7E0D50 : f32
    %38 = vector.broadcast %cst_17 : f32 to vector<8x256xf32>
    %39 = arith.addf %37, %38 : vector<8x256xf32>
    %40 = arith.mulf %39, %35 : vector<8x256xf32>
    %cst_18 = arith.constant 2222880.5 : f32
    %41 = vector.broadcast %cst_18 : f32 to vector<8x256xf32>
    %42 = arith.addf %40, %41 : vector<8x256xf32>
    %43 = arith.mulf %42, %35 : vector<8x256xf32>
    %cst_19 = arith.constant 678289.688 : f32
    %44 = vector.broadcast %cst_19 : f32 to vector<8x256xf32>
    %45 = arith.addf %43, %44 : vector<8x256xf32>
    %46 = arith.mulf %45, %35 : vector<8x256xf32>
    %cst_20 = arith.constant 129347.258 : f32
    %47 = vector.broadcast %cst_20 : f32 to vector<8x256xf32>
    %48 = arith.addf %46, %47 : vector<8x256xf32>
    %49 = arith.mulf %48, %35 : vector<8x256xf32>
    %cst_21 = arith.constant 15784.8809 : f32
    %50 = vector.broadcast %cst_21 : f32 to vector<8x256xf32>
    %51 = arith.addf %49, %50 : vector<8x256xf32>
    %52 = arith.mulf %51, %35 : vector<8x256xf32>
    %cst_22 = arith.constant 1203.83423 : f32
    %53 = vector.broadcast %cst_22 : f32 to vector<8x256xf32>
    %54 = arith.addf %52, %53 : vector<8x256xf32>
    %55 = arith.mulf %54, %35 : vector<8x256xf32>
    %cst_23 = arith.constant 52.4583321 : f32
    %56 = vector.broadcast %cst_23 : f32 to vector<8x256xf32>
    %57 = arith.addf %55, %56 : vector<8x256xf32>
    %58 = arith.mulf %57, %35 : vector<8x256xf32>
    %cst_24 = arith.constant 1.000000e+00 : f32
    %59 = vector.broadcast %cst_24 : f32 to vector<8x256xf32>
    %60 = arith.addf %58, %59 : vector<8x256xf32>
    %cst_25 = arith.constant 0.000000e+00 : f32
    %61 = vector.broadcast %cst_25 : f32 to vector<8x256xf32>
    %62 = arith.mulf %61, %35 : vector<8x256xf32>
    %cst_26 = arith.constant 5.040000e+03 : f32
    %63 = vector.broadcast %cst_26 : f32 to vector<8x256xf32>
    %64 = arith.addf %62, %63 : vector<8x256xf32>
    %65 = arith.mulf %64, %35 : vector<8x256xf32>
    %cst_27 = arith.constant 1.306800e+04 : f32
    %66 = vector.broadcast %cst_27 : f32 to vector<8x256xf32>
    %67 = arith.addf %65, %66 : vector<8x256xf32>
    %68 = arith.mulf %67, %35 : vector<8x256xf32>
    %cst_28 = arith.constant 1.313200e+04 : f32
    %69 = vector.broadcast %cst_28 : f32 to vector<8x256xf32>
    %70 = arith.addf %68, %69 : vector<8x256xf32>
    %71 = arith.mulf %70, %35 : vector<8x256xf32>
    %cst_29 = arith.constant 6.769000e+03 : f32
    %72 = vector.broadcast %cst_29 : f32 to vector<8x256xf32>
    %73 = arith.addf %71, %72 : vector<8x256xf32>
    %74 = arith.mulf %73, %35 : vector<8x256xf32>
    %cst_30 = arith.constant 1.960000e+03 : f32
    %75 = vector.broadcast %cst_30 : f32 to vector<8x256xf32>
    %76 = arith.addf %74, %75 : vector<8x256xf32>
    %77 = arith.mulf %76, %35 : vector<8x256xf32>
    %cst_31 = arith.constant 3.220000e+02 : f32
    %78 = vector.broadcast %cst_31 : f32 to vector<8x256xf32>
    %79 = arith.addf %77, %78 : vector<8x256xf32>
    %80 = arith.mulf %79, %35 : vector<8x256xf32>
    %cst_32 = arith.constant 2.800000e+01 : f32
    %81 = vector.broadcast %cst_32 : f32 to vector<8x256xf32>
    %82 = arith.addf %80, %81 : vector<8x256xf32>
    %83 = arith.mulf %82, %35 : vector<8x256xf32>
    %cst_33 = arith.constant 1.000000e+00 : f32
    %84 = vector.broadcast %cst_33 : f32 to vector<8x256xf32>
    %85 = arith.addf %83, %84 : vector<8x256xf32>
    %cst_34 = arith.constant 6.500000e+00 : f32
    %86 = vector.broadcast %cst_34 : f32 to vector<8x256xf32>
    %87 = arith.addf %30, %86 : vector<8x256xf32>
    %cst_35 = arith.constant 5.000000e-01 : f32
    %88 = vector.broadcast %cst_35 : f32 to vector<8x256xf32>
    %89 = arith.subf %30, %88 : vector<8x256xf32>
    %90 = math.log %87 : vector<8x256xf32>
    %91 = arith.mulf %89, %90 : vector<8x256xf32>
    %92 = arith.subf %91, %87 : vector<8x256xf32>
    %93 = tpu.reciprocal %34 {approx = true} : vector<8x256xf32> -> vector<8x256xf32>
    %cst_36 = arith.constant 3409662.75 : f32
    %94 = vector.broadcast %cst_36 : f32 to vector<8x256xf32>
    %95 = arith.mulf %94, %93 : vector<8x256xf32>
    %cst_37 = arith.constant 0x4A7E0D50 : f32
    %96 = vector.broadcast %cst_37 : f32 to vector<8x256xf32>
    %97 = arith.addf %95, %96 : vector<8x256xf32>
    %98 = arith.mulf %97, %93 : vector<8x256xf32>
    %cst_38 = arith.constant 2222880.5 : f32
    %99 = vector.broadcast %cst_38 : f32 to vector<8x256xf32>
    %100 = arith.addf %98, %99 : vector<8x256xf32>
    %101 = arith.mulf %100, %93 : vector<8x256xf32>
    %cst_39 = arith.constant 678289.688 : f32
    %102 = vector.broadcast %cst_39 : f32 to vector<8x256xf32>
    %103 = arith.addf %101, %102 : vector<8x256xf32>
    %104 = arith.mulf %103, %93 : vector<8x256xf32>
    %cst_40 = arith.constant 129347.258 : f32
    %105 = vector.broadcast %cst_40 : f32 to vector<8x256xf32>
    %106 = arith.addf %104, %105 : vector<8x256xf32>
    %107 = arith.mulf %106, %93 : vector<8x256xf32>
    %cst_41 = arith.constant 15784.8809 : f32
    %108 = vector.broadcast %cst_41 : f32 to vector<8x256xf32>
    %109 = arith.addf %107, %108 : vector<8x256xf32>
    %110 = arith.mulf %109, %93 : vector<8x256xf32>
    %cst_42 = arith.constant 1203.83423 : f32
    %111 = vector.broadcast %cst_42 : f32 to vector<8x256xf32>
    %112 = arith.addf %110, %111 : vector<8x256xf32>
    %113 = arith.mulf %112, %93 : vector<8x256xf32>
    %cst_43 = arith.constant 52.4583321 : f32
    %114 = vector.broadcast %cst_43 : f32 to vector<8x256xf32>
    %115 = arith.addf %113, %114 : vector<8x256xf32>
    %116 = arith.mulf %115, %93 : vector<8x256xf32>
    %cst_44 = arith.constant 1.000000e+00 : f32
    %117 = vector.broadcast %cst_44 : f32 to vector<8x256xf32>
    %118 = arith.addf %116, %117 : vector<8x256xf32>
    %cst_45 = arith.constant 0.000000e+00 : f32
    %119 = vector.broadcast %cst_45 : f32 to vector<8x256xf32>
    %120 = arith.mulf %119, %93 : vector<8x256xf32>
    %cst_46 = arith.constant 5.040000e+03 : f32
    %121 = vector.broadcast %cst_46 : f32 to vector<8x256xf32>
    %122 = arith.addf %120, %121 : vector<8x256xf32>
    %123 = arith.mulf %122, %93 : vector<8x256xf32>
    %cst_47 = arith.constant 1.306800e+04 : f32
    %124 = vector.broadcast %cst_47 : f32 to vector<8x256xf32>
    %125 = arith.addf %123, %124 : vector<8x256xf32>
    %126 = arith.mulf %125, %93 : vector<8x256xf32>
    %cst_48 = arith.constant 1.313200e+04 : f32
    %127 = vector.broadcast %cst_48 : f32 to vector<8x256xf32>
    %128 = arith.addf %126, %127 : vector<8x256xf32>
    %129 = arith.mulf %128, %93 : vector<8x256xf32>
    %cst_49 = arith.constant 6.769000e+03 : f32
    %130 = vector.broadcast %cst_49 : f32 to vector<8x256xf32>
    %131 = arith.addf %129, %130 : vector<8x256xf32>
    %132 = arith.mulf %131, %93 : vector<8x256xf32>
    %cst_50 = arith.constant 1.960000e+03 : f32
    %133 = vector.broadcast %cst_50 : f32 to vector<8x256xf32>
    %134 = arith.addf %132, %133 : vector<8x256xf32>
    %135 = arith.mulf %134, %93 : vector<8x256xf32>
    %cst_51 = arith.constant 3.220000e+02 : f32
    %136 = vector.broadcast %cst_51 : f32 to vector<8x256xf32>
    %137 = arith.addf %135, %136 : vector<8x256xf32>
    %138 = arith.mulf %137, %93 : vector<8x256xf32>
    %cst_52 = arith.constant 2.800000e+01 : f32
    %139 = vector.broadcast %cst_52 : f32 to vector<8x256xf32>
    %140 = arith.addf %138, %139 : vector<8x256xf32>
    %141 = arith.mulf %140, %93 : vector<8x256xf32>
    %cst_53 = arith.constant 1.000000e+00 : f32
    %142 = vector.broadcast %cst_53 : f32 to vector<8x256xf32>
    %143 = arith.addf %141, %142 : vector<8x256xf32>
    %cst_54 = arith.constant 6.500000e+00 : f32
    %144 = vector.broadcast %cst_54 : f32 to vector<8x256xf32>
    %145 = arith.addf %34, %144 : vector<8x256xf32>
    %cst_55 = arith.constant 5.000000e-01 : f32
    %146 = vector.broadcast %cst_55 : f32 to vector<8x256xf32>
    %147 = arith.subf %34, %146 : vector<8x256xf32>
    %148 = math.log %145 : vector<8x256xf32>
    %149 = arith.mulf %147, %148 : vector<8x256xf32>
    %150 = arith.subf %149, %145 : vector<8x256xf32>
    %151 = arith.mulf %60, %143 : vector<8x256xf32>
    %152 = arith.mulf %85, %118 : vector<8x256xf32>
    %cst_56 = arith.constant 1.000000e+00 : f32
    %153 = vector.broadcast %cst_56 : f32 to vector<8x256xf32>
    %154 = arith.select %27, %25, %153 : vector<8x256xi1>, vector<8x256xf32>
    %155 = arith.mulf %152, %154 : vector<8x256xf32>
    %156 = tpu.reciprocal %155 {approx = true} : vector<8x256xf32> -> vector<8x256xf32>
    %157 = arith.mulf %151, %156 : vector<8x256xf32>
    %158 = math.log %157 : vector<8x256xf32>
    %159 = arith.subf %92, %150 : vector<8x256xf32>
    %160 = arith.addf %159, %158 : vector<8x256xf32>
    %161 = vector.broadcast %8 : vector<1x256xf32> to vector<8x256xf32>
    %162 = arith.subf %160, %161 : vector<8x256xf32>
    %cst_57 = arith.constant 0.000000e+00 : f32
    %163 = vector.broadcast %cst_57 : f32 to vector<1x256xf32>
    %164 = arith.subf %163, %6 : vector<1x256xf32>
    %165 = vector.broadcast %164 : vector<1x256xf32> to vector<8x256xf32>
    %166 = arith.mulf %165, %21 : vector<8x256xf32>
    %167 = math.log %16 : vector<8x256xf32>
    %168 = vector.broadcast %7 : vector<1x256xf32> to vector<8x256xf32>
    %169 = arith.addf %167, %168 : vector<8x256xf32>
    %170 = arith.subf %169, %21 : vector<8x256xf32>
    %171 = arith.mulf %4, %170 : vector<8x256xf32>
    %172 = arith.addf %162, %166 : vector<8x256xf32>
    %173 = arith.addf %172, %171 : vector<8x256xf32>
    %cst_58 = arith.constant 0.000000e+00 : f32
    %174 = vector.broadcast %cst_58 : f32 to vector<8x256xf32>
    %175 = arith.subf %174, %173 : vector<8x256xf32>
    %cst_59 = arith.constant -3.000000e+02 : f32
    %cst_60 = arith.constant 3.000000e+02 : f32
    %176 = vector.broadcast %cst_59 : f32 to vector<8x256xf32>
    %177 = arith.maximumf %176, %175 : vector<8x256xf32>
    %178 = vector.broadcast %cst_60 : f32 to vector<8x256xf32>
    %179 = arith.minimumf %178, %177 : vector<8x256xf32>
    %c0_61 = arith.constant 0 : index
    %c0_62 = arith.constant 0 : index
    %180 = vector.load %arg6[%c0_61, %c0_62] : memref<8x256xf32, #tpu.memory_space<vmem>>, vector<8x256xf32>
    %181 = arith.addf %180, %179 : vector<8x256xf32>
    %c0_63 = arith.constant 0 : index
    %c0_64 = arith.constant 0 : index
    %182 = vector.load %arg6[%c0_63, %c0_64] : memref<8x256xf32, #tpu.memory_space<vmem>>, vector<8x256xf32>
    tpu.vector_store %arg6[%c0_63, %c0_64], %181 {strides = array<i32>} : memref<8x256xf32, #tpu.memory_space<vmem>>, vector<8x256xf32>,
    %c0_i32_65 = arith.constant 0 : i32
    %183 = arith.cmpi eq, %arg1, %c0_i32_65 : i32
    %184 = arith.extui %183 : i1 to i32
    %c0_i32_66 = arith.constant 0 : i32
    %185 = arith.cmpi ne, %184, %c0_i32_66 : i32
    scf.if %185 {
      %c0_67 = arith.constant 0 : index
      %c0_68 = arith.constant 0 : index
      %186 = vector.load %arg6[%c0_67, %c0_68] : memref<8x256xf32, #tpu.memory_space<vmem>>, vector<8x256xf32>
      %187 = vector.shape_cast %186 : vector<8x256xf32> to vector<1x8x256xf32>
      %cst_69 = arith.constant dense<0.000000e+00> : vector<1xf32>
      %188 = vector.multi_reduction <add>, %187, %cst_69 [1, 2] : vector<1x8x256xf32> to vector<1xf32>
      %189 = vector.shape_cast %188 : vector<1xf32> to vector<1x1x1xf32>
      %190 = vector.extract %189[0, 0, 0] : f32 from vector<1x1x1xf32>
      %cst_70 = arith.constant 0.000000e+00 : f32
      %191 = vector.broadcast %cst_70 : f32 to vector<1x8x128xf32>
      %192 = vector.broadcast %190 : f32 to vector<1x8x128xf32>
      %193 = arith.addf %192, %191 : vector<1x8x128xf32>
      %c0_71 = arith.constant 0 : index
      %c0_72 = arith.constant 0 : index
      %c0_73 = arith.constant 0 : index
      %194 = vector.load %arg5[%c0_71, %c0_72, %c0_73] : memref<1x8x128xf32, #tpu.memory_space<vmem>>, vector<1x8x128xf32>
      tpu.vector_store %arg5[%c0_71, %c0_72, %c0_73], %193 {strides = array<i32>} : memref<1x8x128xf32, #tpu.memory_space<vmem>>, vector<1x8x128xf32>,
    } else {
    }
    return
  }
  func.func @transform_0(%arg0: i32, %arg1: i32) -> (i32, i32) {
    %c0_i32 = arith.constant 0 : i32
    %c0_i32_0 = arith.constant 0 : i32
    return %c0_i32, %arg1 : i32, i32
  }
  func.func @transform_1(%arg0: i32, %arg1: i32) -> (i32, i32) {
    %c0_i32 = arith.constant 0 : i32
    return %arg0, %arg1 : i32, i32
  }
  func.func @transform_2(%arg0: i32, %arg1: i32) -> (i32, i32) {
    %c0_i32 = arith.constant 0 : i32
    return %arg0, %arg1 : i32, i32
  }
  func.func @transform_3(%arg0: i32, %arg1: i32) -> (i32, i32, i32) {
    %c0_i32 = arith.constant 0 : i32
    %c0_i32_0 = arith.constant 0 : i32
    %c0_i32_1 = arith.constant 0 : i32
    return %arg0, %c0_i32, %c0_i32_0 : i32, i32, i32
  }
}

</mosaic_0001>

<llo_original>
// kernel: tpu_custom_call.1
$region0: #{tpu_custom_call.1}
  #allocation0 [shape = 'u32[]', space=smem, size = 0x4, offset = 0x4, fixed_abs, tag = 'smem constant byte address 0x4 - core index']
  #allocation1 [shape = 'u32[144,128]{1,0:T(1,128)}', space=vmem, size = 0x12000, scoped, tag = 'internal scratch']
  #allocation2 [shape = 'f32[8,256]{1,0:T(8,128)}', space=vmem, size = 0x2000, scoped, tag = 'scratch operand']
  %s0 = inlined_call_operand.hbm [shape: f32[8,256], index: 0, kind: input, shape index: {}]
  %s1 = inlined_call_operand.hbm [shape: f32[8,256], index: 1, kind: input, shape index: {}]
  %s2 = inlined_call_operand.hbm [shape: f32[8,256], index: 2, kind: input, shape index: {}]
  %s3 = inlined_call_operand.hbm [shape: f32[1,8,128], index: 3, kind: output, shape index: {}]
  %s4 = sld [smem:[#allocation0]]
  $region42: #{tpu_custom_call.1} parent=0
    _
  %s6 = ssub.s32 1, %s4
  %s7 = scalar_select 0, %s6, %s4
  $region1: #{tpu_custom_call.1} parent=0
    #allocation3 [shape = 'u8[8192]{0}', space=vmem, size = 0x2000, scoped, tag = 'input window, operand 0, single buffered']
    #allocation4 [shape = 's32[1]{0}', space=sflag, size = 0x4, scoped, tag = 'scoped memory for tpu_custom_call.1']
    #allocation5 [shape = 's32[1]{0}', space=sflag, size = 0x4, scoped, tag = 'scoped memory for tpu_custom_call.1']
    #allocation6 [shape = 'u8[8192]{0}', space=vmem, size = 0x2000, scoped, tag = 'input window, operand 1, single buffered']
    #allocation7 [shape = 's32[1]{0}', space=sflag, size = 0x4, scoped, tag = 'scoped memory for tpu_custom_call.1']
    #allocation8 [shape = 'u8[8192]{0}', space=vmem, size = 0x2000, scoped, tag = 'input window, operand 2, single buffered']
    #allocation9 [shape = 'u8[4096]{0}', space=vmem, size = 0x1000, scoped, tag = 'output window, operand 0, single buffered']
    %8 = vsyncpa [#allocation4], 0
    %9 = vsyncpa [#allocation7], 0
    %10 = vsyncpa [#allocation5], 0
    // Predicated region
    $region2: #{tpu_custom_call.1} parent=1 // pred_check
      _
    $region3: #{tpu_custom_call.1} parent=1 // pred_check_branch
      %12 = sbr.rel (0) target = $region5
    $region4: #{tpu_custom_call.1} parent=1 // pred_region
      %s14 = ssub.s32 256, 256
      %15 = vsyncadd [#allocation4], %s14
      %s17 = sshll.u32 [#allocation3], 4
      %s18 = int_to_ptr.vmem [resolvable:$true] %s17
      %20 = dma.hbm_to_vmem [thread:$0]  %s0, 256, %s18, [#allocation4]
    $region5: #{tpu_custom_call.1} parent=1 // pred_fallthru
      _
    // Predicated region
    $region6: #{tpu_custom_call.1} parent=1 // pred_check
      _
    $region7: #{tpu_custom_call.1} parent=1 // pred_check_branch
      %22 = sbr.rel (0) target = $region9
    $region8: #{tpu_custom_call.1} parent=1 // pred_region
      %s24 = ssub.s32 256, 256
      %25 = vsyncadd [#allocation7], %s24
      %s27 = sshll.u32 [#allocation6], 4
      %s28 = int_to_ptr.vmem [resolvable:$true] %s27
      %30 = dma.hbm_to_vmem [thread:$0]  %s1, 256, %s28, [#allocation7]
    $region9: #{tpu_custom_call.1} parent=1 // pred_fallthru
      _
    // Predicated region
    $region10: #{tpu_custom_call.1} parent=1 // pred_check
      _
    $region11: #{tpu_custom_call.1} parent=1 // pred_check_branch
      %32 = sbr.rel (0) target = $region13
    $region12: #{tpu_custom_call.1} parent=1 // pred_region
      %s34 = ssub.s32 256, 256
      %35 = vsyncadd [#allocation7], %s34
      %s37 = sshll.u32 [#allocation8], 4
      %s38 = int_to_ptr.vmem [resolvable:$true] %s37
      %40 = dma.hbm_to_vmem [thread:$0]  %s2, 256, %s38, [#allocation7]
    $region13: #{tpu_custom_call.1} parent=1 // pred_fallthru
      _
    // Predicated region
    $region14: #{tpu_custom_call.1} parent=1 // pred_check
      _
    $region15: #{tpu_custom_call.1} parent=1 // pred_check_branch
      %42 = sbr.rel (0) target = $region17
    $region16: #{tpu_custom_call.1} parent=1 // pred_region
      %43 = dma.done [#allocation4], 256
    $region17: #{tpu_custom_call.1} parent=1 // pred_fallthru
      _
    // Predicated region
    $region18: #{tpu_custom_call.1} parent=1 // pred_check
      _
    $region19: #{tpu_custom_call.1} parent=1 // pred_check_branch
      %45 = sbr.rel (0) target = $region21
    $region20: #{tpu_custom_call.1} parent=1 // pred_region
      %46 = dma.done [#allocation7], 256
    $region21: #{tpu_custom_call.1} parent=1 // pred_fallthru
      _
    // Predicated region
    $region22: #{tpu_custom_call.1} parent=1 // pred_check
      _
    $region23: #{tpu_custom_call.1} parent=1 // pred_check_branch
      %48 = sbr.rel (0) target = $region25
    $region24: #{tpu_custom_call.1} parent=1 // pred_region
      %49 = dma.done [#allocation7], 256
    $region25: #{tpu_custom_call.1} parent=1 // pred_fallthru
      _
    %p50 = scmp.eq.s32.totalorder 0, 0
    // Predicated region
    $region26: #{tpu_custom_call.1} parent=1 // pred_check
      %p51 = pneg %p50
    $region27: #{tpu_custom_call.1} parent=1 // pred_check_branch
      %53 = sbr.rel (%p51) target = $region29
    $region28: #{tpu_custom_call.1} parent=1 // pred_region
      %54 = vst [vmem:[#allocation2] sm:$0xff] 0.0
      %55 = vst [vmem:[#allocation2 + $0x8] sm:$0xff] 0.0
    $region29: #{tpu_custom_call.1} parent=1 // pred_fallthru
      _
    %v56 = vld [vmem:[#allocation6] sm:$0xff]
    %v57 = vld [vmem:[#allocation6 + $0x8] sm:$0xff]
    %v58 = vld [vmem:[#allocation8] sm:$0xff]
    %v59 = vld [vmem:[#allocation8 + $0x8] sm:$0xff]
    %v60 = vld [vmem:[#allocation3] ss:$8 sm:$0x3]
    %s61 = scalar_lea.vmem [#allocation3], 1
    %v62 = vld [vmem:[%s61] ss:$8 sm:$0x3]
    %s63 = scalar_lea.vmem [#allocation3], 2
    %v64 = vld [vmem:[%s63] ss:$8 sm:$0x3]
    %s65 = scalar_lea.vmem [#allocation3], 3
    %v66 = vld [vmem:[%s65] ss:$8 sm:$0x3]
    %v67 = vmax.f32 %v56, 0.0
    %v68 = vmax.f32 %v57, 0.0
    %v69 = vand.u32 2147483647, %v56
    %v70 = vand.u32 2147483647, %v57
    %v71 = vsub.f32 0.0, %v69
    %v72 = vsub.f32 0.0, %v70
    %v73 = vmul.f32 %v71, 1.442695
    %v74 = vpow.pop %v73
    %v75 = vmul.f32 %v72, 1.442695
    %v76 = vpow.pop %v75
    %v77 = vadd.f32 %v74, 1.0
    %v78 = vlog2.pop %v77
    %v79 = vmul.f32 %v78, 0.6931472
    %v80 = vmul.f32 -0.5, %v74
    %v81 = vadd.f32 %v80, 1.0
    %v82 = vmul.f32 %v81, %v74
    %v83 = vand.u32 2147483647, %v74
    %vm84 = vcmp.lt.f32.partialorder %v83, 0.0004427343
    %v85 = vsel %vm84, %v82, %v79
    %v86 = vadd.f32 %v76, 1.0
    %v87 = vlog2.pop %v86
    %v88 = vmul.f32 %v87, 0.6931472
    %v89 = vmul.f32 -0.5, %v76
    %v90 = vadd.f32 %v89, 1.0
    %v91 = vmul.f32 %v90, %v76
    %v92 = vand.u32 2147483647, %v76
    %vm93 = vcmp.lt.f32.partialorder %v92, 0.0004427343
    %v94 = vsel %vm93, %v91, %v88
    %v95 = vadd.f32 %v67, %v85
    %v96 = vadd.f32 %v68, %v94
    %v98 = vlaneseq
    %v99 = vshrl.u32 %v98, 7
    %v100 = vsub.s32 0, %v99
    %v101 = vrot.slane %v60, %v100
    %v102 = vlaneseq
    %v103 = vshrl.u32 %v102, 7
    %v104 = vsub.s32 1, %v103
    %v105 = vrot.slane %v60, %v104
    %v108 = vmul.f32 %v95, %v101
    %v109 = vmul.f32 %v96, %v105
    %v110 = vadd.f32 %v108, 1e-08
    %v111 = vadd.f32 %v109, 1e-08
    %v112 = vadd.f32 %v110, 1.0
    %v113 = vlog2.pop %v112
    %v114 = vmul.f32 %v113, 0.6931472
    %v115 = vmul.f32 -0.5, %v110
    %v116 = vadd.f32 %v115, 1.0
    %v117 = vmul.f32 %v116, %v110
    %v118 = vand.u32 2147483647, %v110
    %vm119 = vcmp.lt.f32.partialorder %v118, 0.0004427343
    %v120 = vsel %vm119, %v117, %v114
    %v121 = vadd.f32 %v111, 1.0
    %v122 = vlog2.pop %v121
    %v123 = vmul.f32 %v122, 0.6931472
    %v124 = vmul.f32 -0.5, %v111
    %v125 = vadd.f32 %v124, 1.0
    %v126 = vmul.f32 %v125, %v111
    %v127 = vand.u32 2147483647, %v111
    %vm128 = vcmp.lt.f32.partialorder %v127, 0.0004427343
    %v129 = vsel %vm128, %v126, %v123
    %v131 = vlaneseq
    %v132 = vshrl.u32 %v131, 7
    %v133 = vsub.s32 0, %v132
    %v134 = vrot.slane %v62, %v133
    %v135 = vlaneseq
    %v136 = vshrl.u32 %v135, 7
    %v137 = vsub.s32 1, %v136
    %v138 = vrot.slane %v62, %v137
    %v141 = vadd.f32 %v58, %v134
    %v142 = vadd.f32 %v59, %v138
    %v143 = vadd.f32 %v141, 1e-08
    %v144 = vadd.f32 %v142, 1e-08
    %vm145 = vcmp.lt.f32.partialorder %v143, 0.5
    %vm146 = vcmp.lt.f32.partialorder %v144, 0.5
    %v147 = vadd.f32 %v143, 1.0
    %v148 = vadd.f32 %v144, 1.0
    %v149 = vsel %vm145, %v147, %v143
    %v150 = vsel %vm146, %v148, %v144
    %v151 = vadd.f32 %v58, 1.0
    %v152 = vadd.f32 %v59, 1.0
    %v153 = vadd.f32 %v151, 1e-08
    %v154 = vadd.f32 %v152, 1e-08
    %v155 = vrcp.pop %v149
    %v156 = vrcp.pop %v150
    %v157 = vmul.f32 %v155, 3409662.8
    %v158 = vmul.f32 %v156, 3409662.8
    %v159 = vadd.f32 %v157, 4162388.0
    %v160 = vadd.f32 %v158, 4162388.0
    %v161 = vmul.f32 %v159, %v155
    %v162 = vmul.f32 %v160, %v156
    %v163 = vadd.f32 %v161, 2222880.5
    %v164 = vadd.f32 %v162, 2222880.5
    %v165 = vmul.f32 %v163, %v155
    %v166 = vmul.f32 %v164, %v156
    %v167 = vadd.f32 %v165, 678289.7
    %v168 = vadd.f32 %v166, 678289.7
    %v169 = vmul.f32 %v167, %v155
    %v170 = vmul.f32 %v168, %v156
    %v171 = vadd.f32 %v169, 129347.26
    %v172 = vadd.f32 %v170, 129347.26
    %v173 = vmul.f32 %v171, %v155
    %v174 = vmul.f32 %v172, %v156
    %v175 = vadd.f32 %v173, 15784.881
    %v176 = vadd.f32 %v174, 15784.881
    %v177 = vmul.f32 %v175, %v155
    %v178 = vmul.f32 %v176, %v156
    %v179 = vadd.f32 %v177, 1203.8342
    %v180 = vadd.f32 %v178, 1203.8342
    %v181 = vmul.f32 %v179, %v155
    %v182 = vmul.f32 %v180, %v156
    %v183 = vadd.f32 %v181, 52.458332
    %v184 = vadd.f32 %v182, 52.458332
    %v185 = vmul.f32 %v183, %v155
    %v186 = vmul.f32 %v184, %v156
    %v187 = vadd.f32 %v185, 1.0
    %v188 = vadd.f32 %v186, 1.0
    %v189 = vmul.f32 %v155, 0.0
    %v190 = vmul.f32 %v156, 0.0
    %v191 = vadd.f32 %v189, 5040.0
    %v192 = vadd.f32 %v190, 5040.0
    %v193 = vmul.f32 %v191, %v155
    %v194 = vmul.f32 %v192, %v156
    %v195 = vadd.f32 %v193, 13068.0
    %v196 = vadd.f32 %v194, 13068.0
    %v197 = vmul.f32 %v195, %v155
    %v198 = vmul.f32 %v196, %v156
    %v199 = vadd.f32 %v197, 13132.0
    %v200 = vadd.f32 %v198, 13132.0
    %v201 = vmul.f32 %v199, %v155
    %v202 = vmul.f32 %v200, %v156
    %v203 = vadd.f32 %v201, 6769.0
    %v204 = vadd.f32 %v202, 6769.0
    %v205 = vmul.f32 %v203, %v155
    %v206 = vmul.f32 %v204, %v156
    %v207 = vadd.f32 %v205, 1960.0
    %v208 = vadd.f32 %v206, 1960.0
    %v209 = vmul.f32 %v207, %v155
    %v210 = vmul.f32 %v208, %v156
    %v211 = vadd.f32 %v209, 322.0
    %v212 = vadd.f32 %v210, 322.0
    %v213 = vmul.f32 %v211, %v155
    %v214 = vmul.f32 %v212, %v156
    %v215 = vadd.f32 %v213, 28.0
    %v216 = vadd.f32 %v214, 28.0
    %v217 = vmul.f32 %v215, %v155
    %v218 = vmul.f32 %v216, %v156
    %v219 = vadd.f32 %v217, 1.0
    %v220 = vadd.f32 %v218, 1.0
    %v221 = vadd.f32 %v149, 6.5
    %v222 = vadd.f32 %v150, 6.5
    %v223 = vsub.f32 %v149, 0.5
    %v224 = vsub.f32 %v150, 0.5
    %v225 = vlog2.pop %v221
    %v226 = vmul.f32 %v225, 0.6931472
    %v227 = vlog2.pop %v222
    %v228 = vmul.f32 %v227, 0.6931472
    %v229 = vmul.f32 %v223, %v226
    %v230 = vmul.f32 %v224, %v228
    %v231 = vsub.f32 %v229, %v221
    %v232 = vsub.f32 %v230, %v222
    %v233 = vrcp.pop %v153
    %v234 = vrcp.pop %v154
    %v235 = vmul.f32 %v233, 3409662.8
    %v236 = vmul.f32 %v234, 3409662.8
    %v237 = vadd.f32 %v235, 4162388.0
    %v238 = vadd.f32 %v236, 4162388.0
    %v239 = vmul.f32 %v237, %v233
    %v240 = vmul.f32 %v238, %v234
    %v241 = vadd.f32 %v239, 2222880.5
    %v242 = vadd.f32 %v240, 2222880.5
    %v243 = vmul.f32 %v241, %v233
    %v244 = vmul.f32 %v242, %v234
    %v245 = vadd.f32 %v243, 678289.7
    %v246 = vadd.f32 %v244, 678289.7
    %v247 = vmul.f32 %v245, %v233
    %v248 = vmul.f32 %v246, %v234
    %v249 = vadd.f32 %v247, 129347.26
    %v250 = vadd.f32 %v248, 129347.26
    %v251 = vmul.f32 %v249, %v233
    %v252 = vmul.f32 %v250, %v234
    %v253 = vadd.f32 %v251, 15784.881
    %v254 = vadd.f32 %v252, 15784.881
    %v255 = vmul.f32 %v253, %v233
    %v256 = vmul.f32 %v254, %v234
    %v257 = vadd.f32 %v255, 1203.8342
    %v258 = vadd.f32 %v256, 1203.8342
    %v259 = vmul.f32 %v257, %v233
    %v260 = vmul.f32 %v258, %v234
    %v261 = vadd.f32 %v259, 52.458332
    %v262 = vadd.f32 %v260, 52.458332
    %v263 = vmul.f32 %v261, %v233
    %v264 = vmul.f32 %v262, %v234
    %v265 = vadd.f32 %v263, 1.0
    %v266 = vadd.f32 %v264, 1.0
    %v267 = vmul.f32 %v233, 0.0
    %v268 = vmul.f32 %v234, 0.0
    %v269 = vadd.f32 %v267, 5040.0
    %v270 = vadd.f32 %v268, 5040.0
    %v271 = vmul.f32 %v269, %v233
    %v272 = vmul.f32 %v270, %v234
    %v273 = vadd.f32 %v271, 13068.0
    %v274 = vadd.f32 %v272, 13068.0
    %v275 = vmul.f32 %v273, %v233
    %v276 = vmul.f32 %v274, %v234
    %v277 = vadd.f32 %v275, 13132.0
    %v278 = vadd.f32 %v276, 13132.0
    %v279 = vmul.f32 %v277, %v233
    %v280 = vmul.f32 %v278, %v234
    %v281 = vadd.f32 %v279, 6769.0
    %v282 = vadd.f32 %v280, 6769.0
    %v283 = vmul.f32 %v281, %v233
    %v284 = vmul.f32 %v282, %v234
    %v285 = vadd.f32 %v283, 1960.0
    %v286 = vadd.f32 %v284, 1960.0
    %v287 = vmul.f32 %v285, %v233
    %v288 = vmul.f32 %v286, %v234
    %v289 = vadd.f32 %v287, 322.0
    %v290 = vadd.f32 %v288, 322.0
    %v291 = vmul.f32 %v289, %v233
    %v292 = vmul.f32 %v290, %v234
    %v293 = vadd.f32 %v291, 28.0
    %v294 = vadd.f32 %v292, 28.0
    %v295 = vmul.f32 %v293, %v233
    %v296 = vmul.f32 %v294, %v234
    %v297 = vadd.f32 %v295, 1.0
    %v298 = vadd.f32 %v296, 1.0
    %v299 = vadd.f32 %v153, 6.5
    %v300 = vadd.f32 %v154, 6.5
    %v301 = vsub.f32 %v153, 0.5
    %v302 = vsub.f32 %v154, 0.5
    %v303 = vlog2.pop %v299
    %v304 = vmul.f32 %v303, 0.6931472
    %v305 = vlog2.pop %v300
    %v306 = vmul.f32 %v305, 0.6931472
    %v307 = vmul.f32 %v301, %v304
    %v308 = vmul.f32 %v302, %v306
    %v309 = vsub.f32 %v307, %v299
    %v310 = vsub.f32 %v308, %v300
    %v311 = vmul.f32 %v187, %v297
    %v312 = vmul.f32 %v188, %v298
    %v313 = vmul.f32 %v219, %v265
    %v314 = vmul.f32 %v220, %v266
    %v315 = vsel %vm145, %v143, 1.0
    %v316 = vsel %vm146, %v144, 1.0
    %v317 = vmul.f32 %v313, %v315
    %v318 = vmul.f32 %v314, %v316
    %v319 = vrcp.pop %v317
    %v320 = vrcp.pop %v318
    %v321 = vmul.f32 %v311, %v319
    %v322 = vmul.f32 %v312, %v320
    %v323 = vlog2.pop %v321
    %v324 = vmul.f32 %v323, 0.6931472
    %v325 = vlog2.pop %v322
    %v326 = vmul.f32 %v325, 0.6931472
    %v327 = vsub.f32 %v231, %v309
    %v328 = vsub.f32 %v232, %v310
    %v329 = vadd.f32 %v327, %v324
    %v330 = vadd.f32 %v328, %v326
    %v332 = vlaneseq
    %v333 = vshrl.u32 %v332, 7
    %v334 = vsub.s32 0, %v333
    %v335 = vrot.slane %v66, %v334
    %v336 = vlaneseq
    %v337 = vshrl.u32 %v336, 7
    %v338 = vsub.s32 1, %v337
    %v339 = vrot.slane %v66, %v338
    %v342 = vsub.f32 %v329, %v335
    %v343 = vsub.f32 %v330, %v339
    %v344 = vsub.f32 0.0, %v62
    %v346 = vlaneseq
    %v347 = vshrl.u32 %v346, 7
    %v348 = vsub.s32 0, %v347
    %v349 = vrot.slane %v344, %v348
    %v350 = vlaneseq
    %v351 = vshrl.u32 %v350, 7
    %v352 = vsub.s32 1, %v351
    %v353 = vrot.slane %v344, %v352
    %v356 = vmul.f32 %v349, %v120
    %v357 = vmul.f32 %v353, %v129
    %v358 = vlog2.pop %v95
    %v359 = vmul.f32 %v358, 0.6931472
    %v360 = vlog2.pop %v96
    %v361 = vmul.f32 %v360, 0.6931472
    %v363 = vlaneseq
    %v364 = vshrl.u32 %v363, 7
    %v365 = vsub.s32 0, %v364
    %v366 = vrot.slane %v64, %v365
    %v367 = vlaneseq
    %v368 = vshrl.u32 %v367, 7
    %v369 = vsub.s32 1, %v368
    %v370 = vrot.slane %v64, %v369
    %v373 = vadd.f32 %v359, %v366
    %v374 = vadd.f32 %v361, %v370
    %v375 = vsub.f32 %v373, %v120
    %v376 = vsub.f32 %v374, %v129
    %v377 = vmul.f32 %v58, %v375
    %v378 = vmul.f32 %v59, %v376
    %v379 = vadd.f32 %v342, %v356
    %v380 = vadd.f32 %v343, %v357
    %v381 = vadd.f32 %v379, %v377
    %v382 = vadd.f32 %v380, %v378
    %v383 = vsub.f32 0.0, %v381
    %v384 = vsub.f32 0.0, %v382
    %v385 = vmax.f32 %v383, -300.0
    %v386 = vmax.f32 %v384, -300.0
    %v387 = vmin.f32 %v385, 300.0
    %v388 = vmin.f32 %v386, 300.0
    %v389 = vld [vmem:[#allocation2] sm:$0xff]
    %v390 = vld [vmem:[#allocation2 + $0x8] sm:$0xff]
    %v391 = vadd.f32 %v389, %v387
    %v392 = vadd.f32 %v390, %v388
    %393 = vst [vmem:[#allocation2] sm:$0xff] %v391
    %394 = vst [vmem:[#allocation2 + $0x8] sm:$0xff] %v392
    // Predicated region
    $region30: #{tpu_custom_call.1} parent=1 // pred_check
      %p395 = pneg %p50
    $region31: #{tpu_custom_call.1} parent=1 // pred_check_branch
      %397 = sbr.rel (%p395) target = $region33
    $region32: #{tpu_custom_call.1} parent=1 // pred_region
      %v398 = vld [vmem:[#allocation2] sm:$0xff]
      %v399 = vld [vmem:[#allocation2 + $0x8] sm:$0xff]
      %v400 = vadd.f32 %v398, %v399
      %401 = vadd.xlane.f32.xlu0 %v400
      %v402 = vpop.xlane.xlu0 %401
      %v403 = vrot.slane %v402, 4
      %v404 = vadd.f32 %v402, %v403
      %v405 = vrot.slane %v404, 2
      %v406 = vadd.f32 %v404, %v405
      %v407 = vrot.slane %v406, 1
      %v408 = vadd.f32 %v406, %v407
      %s409 = vtos %v408
      %v410 = vstv %s409
      %v411 = vadd.f32 %v410, 0.0
      %412 = vst [vmem:[#allocation9] sm:$0xff] %v411
    $region33: #{tpu_custom_call.1} parent=1 // pred_fallthru
      _
    // Predicated region
    $region34: #{tpu_custom_call.1} parent=1 // pred_check
      _
    $region35: #{tpu_custom_call.1} parent=1 // pred_check_branch
      %414 = sbr.rel (0) target = $region37
    $region36: #{tpu_custom_call.1} parent=1 // pred_region
      %s416 = ssub.s32 128, 128
      %417 = vsyncadd [#allocation5], %s416
      %s419 = sshll.u32 [#allocation9], 4
      %s420 = int_to_ptr.vmem [resolvable:$true] %s419
      %422 = dma.vmem_to_hbm [thread:$0]  %s420, 128, %s3, [#allocation5]
    $region37: #{tpu_custom_call.1} parent=1 // pred_fallthru
      _
    // Predicated region
    $region38: #{tpu_custom_call.1} parent=1 // pred_check
      _
    $region39: #{tpu_custom_call.1} parent=1 // pred_check_branch
      %424 = sbr.rel (0) target = $region41
    $region40: #{tpu_custom_call.1} parent=1 // pred_region
      %425 = dma.done [#allocation5], 128
    $region41: #{tpu_custom_call.1} parent=1 // pred_fallthru
      _
    %426 = vsyncpa [#allocation4], 1
    %427 = vsyncpa [#allocation7], 1
    %428 = vsyncpa [#allocation5], 1

</llo_original>
